<compile_context>
chip_gen: v7x
topology: tpu7x:2x2x1
jax: 0.10.0
libtpu: 0.0.40
codegen_flags: <defaults>
</compile_context>

<pallas_src>
import jax
import jax.numpy as jnp
import numpy as np
from jax.experimental import pallas as pl
from jax.experimental.pallas import tpu as pltpu

# ---- configuration (matches DaggerExpert defaults geomDim=4, n_futures=3) ----
GEOM_DIM = 4
N_FUTURES = 3
T = 3
BASE_OBS = 10
NENVS = 8                                    # batch of envs (demo size)
PROP_IN = 30                                 # prop_encoder input width
TAIL = PROP_IN + GEOM_DIM * (N_FUTURES + 1) + 1           # tail_size = 47
TOTAL_OBS = (T + 1) * BASE_OBS + TAIL                     # total_obs_size = 87

PROP_HID, PROP_LAT = 64, 16
GEOM_HID, GEOM_LAT = 32, 8
OUT_DIM = PROP_LAT + (N_FUTURES + 1) * GEOM_LAT           # 48

TAIL_START = TOTAL_OBS - TAIL                             # start of obs tail
ENC_IN = PROP_IN + GEOM_DIM * (N_FUTURES + 1)             # 46 contiguous cols
# note: the final obs column is dropped (the "-1" in the torch slices)

# padded, lane-dense dims used by the fused kernel
IN_PAD = 128      # fused encoder input  46 -> 128
HID_PAD = 256     # fused hidden         192 -> 256 (multiple of 128)
OUT_PAD = 128     # fused output         48 -> 128
MAX_ROW_TILE = 128


def _round_up(x, m):
    return (x + m - 1) // m * m


# ------------------------------- Pallas kernel -------------------------------
def dagger_expert_kernel(x_ref, w1_ref, b1_ref, w2_ref, b2_ref, out_ref):
    # One fused block-diagonal MLP: two MXU dots, one EUP tanh, one full-width
    # lane-dense (128-wide) store.  Block-diagonal zero blocks contribute
    # nothing, so the result equals
    # [prop_encoder(prop_x), geom_encoder(chunk_0..3)] exactly.
    h = jnp.tanh(
        jnp.dot(x_ref[...], w1_ref[...], preferred_element_type=jnp.float32)
        + b1_ref[...]
    )
    out_ref[...] = (
        jnp.dot(h, w2_ref[...], preferred_element_type=jnp.float32) + b2_ref[...]
    )


# --------------------------- fused-weight construction ------------------------
def build_fused_params(p):
    """Build block-diagonal, zero-padded fused weights once (outside kernel)."""
    w1 = jnp.zeros((IN_PAD, HID_PAD), jnp.float32)
    w1 = w1.at[:PROP_IN, :PROP_HID].set(p["pw1"])
    b1 = jnp.zeros((1, HID_PAD), jnp.float32)
    b1 = b1.at[:, :PROP_HID].set(p["pb1"])
    w2 = jnp.zeros((HID_PAD, OUT_PAD), jnp.float32)
    w2 = w2.at[:PROP_HID, :PROP_LAT].set(p["pw2"])
    b2 = jnp.zeros((1, OUT_PAD), jnp.float32)
    b2 = b2.at[:, :PROP_LAT].set(p["pb2"])
    for c in range(N_FUTURES + 1):
        ri = PROP_IN + c * GEOM_DIM            # input rows of geom chunk c
        rh = PROP_HID + c * GEOM_HID           # hidden cols of geom chunk c
        ro = PROP_LAT + c * GEOM_LAT           # output cols of geom chunk c
        w1 = w1.at[ri:ri + GEOM_DIM, rh:rh + GEOM_HID].set(p["gw1"])
        b1 = b1.at[:, rh:rh + GEOM_HID].set(p["gb1"])
        w2 = w2.at[rh:rh + GEOM_HID, ro:ro + GEOM_LAT].set(p["gw2"])
        b2 = b2.at[:, ro:ro + GEOM_LAT].set(p["gb2"])
    # padded hidden cols: bias 0 -> tanh(0)=0 and matching w2 rows are 0, so
    # padding never leaks into the real 48 output columns.
    return {"w1": w1, "b1": b1, "w2": w2, "b2": b2}


# ----------------------------------- wrapper ----------------------------------
@jax.jit
def dagger_expert_forward(obs, fused):
    B = obs.shape[0]
    # pre-slice the contiguous prop+geom region in XLA (lane-0 aligned input)
    x = obs[:, TAIL_START:TAIL_START + ENC_IN]

    # row tile: multiple of 8 (f32 sublane), capped at 128
    tile = min(MAX_ROW_TILE, _round_up(B, 8))
    b_pad = _round_up(B, tile)
    x = jnp.pad(x, ((0, b_pad - B), (0, IN_PAD - ENC_IN)))

    out = pl.pallas_call(
        dagger_expert_kernel,
        out_shape=jax.ShapeDtypeStruct((b_pad, OUT_PAD), jnp.float32),
        grid=(b_pad // tile,),
        in_specs=[
            pl.BlockSpec((tile, IN_PAD), lambda i: (i, 0)),
            pl.BlockSpec((IN_PAD, HID_PAD), lambda i: (0, 0)),
            pl.BlockSpec((1, HID_PAD), lambda i: (0, 0)),
            pl.BlockSpec((HID_PAD, OUT_PAD), lambda i: (0, 0)),
            pl.BlockSpec((1, OUT_PAD), lambda i: (0, 0)),
        ],
        out_specs=pl.BlockSpec((tile, OUT_PAD), lambda i: (i, 0)),
        compiler_params=pltpu.CompilerParams(
            dimension_semantics=("parallel",),   # v7x: split batch over 2 TCs
        ),
    )(x, fused["w1"], fused["b1"], fused["w2"], fused["b2"])

    # strip row padding and the zero-padded lanes (free layout plumbing in XLA)
    return out[:B, :OUT_DIM]


# --------------------------- plain-JAX reference ------------------------------
def reference_forward(obs, p):
    tail = obs[:, -TAIL:]
    prop_x = tail[:, :-(GEOM_DIM * (N_FUTURES + 1) + 1)]
    prop_lat = jnp.tanh(prop_x @ p["pw1"] + p["pb1"]) @ p["pw2"] + p["pb2"]
    geom_lats = []
    for i in reversed(range(N_FUTURES + 1)):
        start = -(i + 1) * GEOM_DIM - 1
        end = -i * GEOM_DIM - 1
        chunk = tail[:, start:] if end == 0 else tail[:, start:end]
        geom_lats.append(jnp.tanh(chunk @ p["gw1"] + p["gb1"]) @ p["gw2"] + p["gb2"])
    return jnp.concatenate([prop_lat] + geom_lats, axis=1)


# ---------------------- init-time stats (unused in forward) -------------------
def get_tiled_scales(invec, nenvs, total_obs_size, base_obs_size, T):
    # Faithful port of DaggerExpert.get_tiled_scales.  mean/var are stored at
    # __init__ but never used by forward(), so they do not enter the kernel.
    outvec = np.zeros([nenvs, total_obs_size], dtype=np.float32)
    outvec[:, :base_obs_size * T] = np.tile(invec[0, :base_obs_size], [1, T])
    outvec[:, base_obs_size * T:] = invec[0]
    return outvec


if __name__ == "__main__":
    key = jax.random.PRNGKey(0)
    kobs, k1, k2, k3, k4 = jax.random.split(key, 5)

    obs = jax.random.normal(kobs, (NENVS, TOTAL_OBS), dtype=jnp.float32)

    params = {
        "pw1": 0.1 * jax.random.normal(k1, (PROP_IN, PROP_HID), jnp.float32),
        "pb1": jnp.zeros((1, PROP_HID), jnp.float32) + 0.01,
        "pw2": 0.1 * jax.random.normal(k2, (PROP_HID, PROP_LAT), jnp.float32),
        "pb2": jnp.zeros((1, PROP_LAT), jnp.float32) - 0.01,
        "gw1": 0.1 * jax.random.normal(k3, (GEOM_DIM, GEOM_HID), jnp.float32),
        "gb1": jnp.zeros((1, GEOM_HID), jnp.float32) + 0.02,
        "gw2": 0.1 * jax.random.normal(k4, (GEOM_HID, GEOM_LAT), jnp.float32),
        "gb2": jnp.zeros((1, GEOM_LAT), jnp.float32) - 0.02,
    }
    fused = jax.tree_util.tree_map(jax.block_until_ready, build_fused_params(params))

    # init-only stats (synthesized deterministically instead of CSV load)
    # TODO(synk): real module loads mean/var CSVs + a TorchScript policy; both
    # are synthesized here since forward() only depends on encoder weights.
    stats_vec = np.arange(BASE_OBS + TAIL, dtype=np.float32)[None, :] * 0.01 + 1.0
    _mean = get_tiled_scales(stats_vec, NENVS, TOTAL_OBS, BASE_OBS, T)
    _var = get_tiled_scales(stats_vec + 1.0, NENVS, TOTAL_OBS, BASE_OBS, T)

    out = dagger_expert_forward(obs, fused)
    jax.block_until_ready(out)

    ref = reference_forward(obs, params)
    np.testing.assert_allclose(np.asarray(out), np.asarray(ref), rtol=1e-5, atol=1e-5)
    assert out.shape == (NENVS, OUT_DIM) and out.dtype == jnp.float32

    print("KERNEL_OK")
</pallas_src>

<mosaic_0001>
module attributes {stable_mosaic.version = 11 : i64} {
  func.func @dagger_expert_kernel(%arg0: i32, %arg1: memref<8x128xf32, #tpu.memory_space<vmem>>, %arg2: memref<128x256xf32, #tpu.memory_space<vmem>>, %arg3: memref<1x256xf32, #tpu.memory_space<vmem>>, %arg4: memref<256x128xf32, #tpu.memory_space<vmem>>, %arg5: memref<1x128xf32, #tpu.memory_space<vmem>>, %arg6: memref<8x128xf32, #tpu.memory_space<vmem>>) attributes {dimension_semantics = [#tpu.dimension_semantics<parallel>], iteration_bounds = array<i64: 1>, scalar_prefetch = 0 : i64, scratch_operands = 0 : i64, tpu.core_type = #tpu.core_type<tc>, window_params = [{transform_indices = @transform_0, window_bounds = array<i64: 8, 128>}, {pipeline_mode = #tpu.pipeline_mode<synchronous>, transform_indices = @transform_1, window_bounds = array<i64: 128, 256>}, {pipeline_mode = #tpu.pipeline_mode<synchronous>, transform_indices = @transform_2, window_bounds = array<i64: 1, 256>}, {pipeline_mode = #tpu.pipeline_mode<synchronous>, transform_indices = @transform_3, window_bounds = array<i64: 256, 128>}, {pipeline_mode = #tpu.pipeline_mode<synchronous>, transform_indices = @transform_4, window_bounds = array<i64: 1, 128>}, {transform_indices = @transform_5, window_bounds = array<i64: 8, 128>}]} {
    %c0 = arith.constant 0 : index
    %c0_0 = arith.constant 0 : index
    %0 = vector.load %arg1[%c0, %c0_0] : memref<8x128xf32, #tpu.memory_space<vmem>>, vector<8x128xf32>
    %c0_1 = arith.constant 0 : index
    %c0_2 = arith.constant 0 : index
    %1 = vector.load %arg2[%c0_1, %c0_2] : memref<128x256xf32, #tpu.memory_space<vmem>>, vector<128x256xf32>
    %cst = arith.constant dense<0.000000e+00> : vector<8x256xf32>
    %2 = tpu.matmul %0, %1, %cst {dimension_numbers = #tpu.dot_dimension_numbers<[1], [0], [0], [1], [0, 0, 1, 1], [], []>} : vector<8x128xf32>, vector<128x256xf32>, vector<8x256xf32> -> vector<8x256xf32>
    %c0_3 = arith.constant 0 : index
    %c0_4 = arith.constant 0 : index
    %3 = vector.load %arg3[%c0_3, %c0_4] : memref<1x256xf32, #tpu.memory_space<vmem>>, vector<1x256xf32>
    %4 = vector.broadcast %3 : vector<1x256xf32> to vector<8x256xf32>
    %5 = arith.addf %2, %4 : vector<8x256xf32>
    %6 = math.tanh %5 : vector<8x256xf32>
    %c0_5 = arith.constant 0 : index
    %c0_6 = arith.constant 0 : index
    %7 = vector.load %arg4[%c0_5, %c0_6] : memref<256x128xf32, #tpu.memory_space<vmem>>, vector<256x128xf32>
    %cst_7 = arith.constant dense<0.000000e+00> : vector<8x128xf32>
    %8 = tpu.matmul %6, %7, %cst_7 {dimension_numbers = #tpu.dot_dimension_numbers<[1], [0], [0], [1], [0, 0, 1, 1], [], []>} : vector<8x256xf32>, vector<256x128xf32>, vector<8x128xf32> -> vector<8x128xf32>
    %c0_8 = arith.constant 0 : index
    %c0_9 = arith.constant 0 : index
    %9 = vector.load %arg5[%c0_8, %c0_9] : memref<1x128xf32, #tpu.memory_space<vmem>>, vector<1x128xf32>
    %10 = vector.broadcast %9 : vector<1x128xf32> to vector<8x128xf32>
    %11 = arith.addf %8, %10 : vector<8x128xf32>
    %c0_10 = arith.constant 0 : index
    %c0_11 = arith.constant 0 : index
    %12 = vector.load %arg6[%c0_10, %c0_11] : memref<8x128xf32, #tpu.memory_space<vmem>>, vector<8x128xf32>
    tpu.vector_store %arg6[%c0_10, %c0_11], %11 {strides = array<i32>} : memref<8x128xf32, #tpu.memory_space<vmem>>, vector<8x128xf32>,
    return
  }
  func.func @transform_0(%arg0: i32) -> (i32, i32) {
    %c0_i32 = arith.constant 0 : i32
    %c0_i32_0 = arith.constant 0 : i32
    return %arg0, %c0_i32 : i32, i32
  }
  func.func @transform_1(%arg0: i32) -> (i32, i32) {
    %c0_i32 = arith.constant 0 : i32
    %c0_i32_0 = arith.constant 0 : i32
    %c0_i32_1 = arith.constant 0 : i32
    return %c0_i32, %c0_i32_0 : i32, i32
  }
  func.func @transform_2(%arg0: i32) -> (i32, i32) {
    %c0_i32 = arith.constant 0 : i32
    %c0_i32_0 = arith.constant 0 : i32
    %c0_i32_1 = arith.constant 0 : i32
    return %c0_i32, %c0_i32_0 : i32, i32
  }
  func.func @transform_3(%arg0: i32) -> (i32, i32) {
    %c0_i32 = arith.constant 0 : i32
    %c0_i32_0 = arith.constant 0 : i32
    %c0_i32_1 = arith.constant 0 : i32
    return %c0_i32, %c0_i32_0 : i32, i32
  }
  func.func @transform_4(%arg0: i32) -> (i32, i32) {
    %c0_i32 = arith.constant 0 : i32
    %c0_i32_0 = arith.constant 0 : i32
    %c0_i32_1 = arith.constant 0 : i32
    return %c0_i32, %c0_i32_0 : i32, i32
  }
  func.func @transform_5(%arg0: i32) -> (i32, i32) {
    %c0_i32 = arith.constant 0 : i32
    %c0_i32_0 = arith.constant 0 : i32
    return %arg0, %c0_i32 : i32, i32
  }
}

</mosaic_0001>

<llo_original>
// kernel: dagger_expert_forward.1
$region0: #{dagger_expert_forward.1}
  #allocation0 [shape = 'u32[]', space=smem, size = 0x4, offset = 0x4, fixed_abs, tag = 'smem constant byte address 0x4 - core index']
  #allocation1 [shape = 'u32[144,128]{1,0:T(1,128)}', space=vmem, size = 0x12000, scoped, tag = 'internal scratch']
  %s0 = inlined_call_operand.vmem [shape: f32[8,128], index: 0, kind: input, shape index: {}]
  %s1 = inlined_call_operand.hbm [shape: f32[128,256], index: 1, kind: input, shape index: {}]
  %s2 = inlined_call_operand.vmem [shape: f32[1,256], index: 2, kind: input, shape index: {}]
  %s3 = inlined_call_operand.hbm [shape: f32[256,128], index: 3, kind: input, shape index: {}]
  %s4 = inlined_call_operand.vmem [shape: f32[1,128], index: 4, kind: input, shape index: {}]
  %s5 = inlined_call_operand.hbm [shape: f32[8,128], index: 5, kind: output, shape index: {}]
  %s6 = sld [smem:[#allocation0]]
  $region38: #{dagger_expert_forward.1} parent=0
    _
  %s8 = ssub.s32 1, %s6
  %s9 = scalar_select 0, %s8, %s6
  $region1: #{dagger_expert_forward.1} parent=0
    #allocation2 [shape = 'u8[131072]{0}', space=vmem, size = 0x20000, scoped, tag = 'input window, operand 1, single buffered']
    #allocation3 [shape = 's32[1]{0}', space=sflag, size = 0x4, scoped, tag = 'scoped memory for dagger_expert_forward.1']
    #allocation4 [shape = 's32[1]{0}', space=sflag, size = 0x4, scoped, tag = 'scoped memory for dagger_expert_forward.1']
    #allocation5 [shape = 'u8[131072]{0}', space=vmem, size = 0x20000, scoped, tag = 'input window, operand 3, single buffered']
    #allocation6 [shape = 's32[1]{0}', space=sflag, size = 0x4, scoped, tag = 'scoped memory for dagger_expert_forward.1']
    #allocation7 [shape = 'u8[4096]{0}', space=vmem, size = 0x1000, scoped, tag = 'output window, operand 0, single buffered']
    %10 = vsyncpa [#allocation3], 0
    %11 = vsyncpa [#allocation6], 0
    %12 = vsyncpa [#allocation4], 0
    // Predicated region
    $region2: #{dagger_expert_forward.1} parent=1 // pred_check
      _
    $region3: #{dagger_expert_forward.1} parent=1 // pred_check_branch
      %14 = sbr.rel (0) target = $region5
    $region4: #{dagger_expert_forward.1} parent=1 // pred_region
      _
    $region5: #{dagger_expert_forward.1} parent=1 // pred_fallthru
      _
    // Predicated region
    $region6: #{dagger_expert_forward.1} parent=1 // pred_check
      _
    $region7: #{dagger_expert_forward.1} parent=1 // pred_check_branch
      %16 = sbr.rel (0) target = $region9
    $region8: #{dagger_expert_forward.1} parent=1 // pred_region
      %s18 = ssub.s32 4096, 4096
      %19 = vsyncadd [#allocation3], %s18
      %s20 = sshll.u32 [#allocation2], 4
      %s21 = int_to_ptr.vmem [resolvable:$true] %s20
      %26 = dma.hbm_to_vmem [thread:$0]  %s1, 4096, %s21, [#allocation3], 256, 256, 16
    $region9: #{dagger_expert_forward.1} parent=1 // pred_fallthru
      _
    // Predicated region
    $region10: #{dagger_expert_forward.1} parent=1 // pred_check
      _
    $region11: #{dagger_expert_forward.1} parent=1 // pred_check_branch
      %28 = sbr.rel (0) target = $region13
    $region12: #{dagger_expert_forward.1} parent=1 // pred_region
      _
    $region13: #{dagger_expert_forward.1} parent=1 // pred_fallthru
      _
    // Predicated region
    $region14: #{dagger_expert_forward.1} parent=1 // pred_check
      _
    $region15: #{dagger_expert_forward.1} parent=1 // pred_check_branch
      %30 = sbr.rel (0) target = $region17
    $region16: #{dagger_expert_forward.1} parent=1 // pred_region
      %s32 = ssub.s32 4096, 4096
      %33 = vsyncadd [#allocation6], %s32
      %s34 = sshll.u32 [#allocation5], 4
      %s35 = int_to_ptr.vmem [resolvable:$true] %s34
      %40 = dma.hbm_to_vmem [thread:$0]  %s3, 4096, %s35, [#allocation6], 128, 128, 8
    $region17: #{dagger_expert_forward.1} parent=1 // pred_fallthru
      _
    // Predicated region
    $region18: #{dagger_expert_forward.1} parent=1 // pred_check
      _
    $region19: #{dagger_expert_forward.1} parent=1 // pred_check_branch
      %42 = sbr.rel (0) target = $region21
    $region20: #{dagger_expert_forward.1} parent=1 // pred_region
      _
    $region21: #{dagger_expert_forward.1} parent=1 // pred_fallthru
      _
    // Predicated region
    $region22: #{dagger_expert_forward.1} parent=1 // pred_check
      _
    $region23: #{dagger_expert_forward.1} parent=1 // pred_check_branch
      %44 = sbr.rel (0) target = $region25
    $region24: #{dagger_expert_forward.1} parent=1 // pred_region
      %45 = dma.done [#allocation3], 4096
    $region25: #{dagger_expert_forward.1} parent=1 // pred_fallthru
      _
    // Predicated region
    $region26: #{dagger_expert_forward.1} parent=1 // pred_check
      _
    $region27: #{dagger_expert_forward.1} parent=1 // pred_check_branch
      %47 = sbr.rel (0) target = $region29
    $region28: #{dagger_expert_forward.1} parent=1 // pred_region
      %48 = dma.done [#allocation6], 4096
    $region29: #{dagger_expert_forward.1} parent=1 // pred_fallthru
      _
    %v49 = vld [vmem:[%s0] sm:$0xff]
    %v50 = vld [vmem:[#allocation2] sm:$0xff]
    %v51 = vld [vmem:[#allocation2 + $0x8] sm:$0xff]
    %v52 = vld [vmem:[#allocation2 + $0x10] sm:$0xff]
    %v53 = vld [vmem:[#allocation2 + $0x18] sm:$0xff]
    %v54 = vld [vmem:[#allocation2 + $0x20] sm:$0xff]
    %v55 = vld [vmem:[#allocation2 + $0x28] sm:$0xff]
    %v56 = vld [vmem:[#allocation2 + $0x30] sm:$0xff]
    %v57 = vld [vmem:[#allocation2 + $0x38] sm:$0xff]
    %v58 = vld [vmem:[#allocation2 + $0x40] sm:$0xff]
    %v59 = vld [vmem:[#allocation2 + $0x48] sm:$0xff]
    %v60 = vld [vmem:[#allocation2 + $0x50] sm:$0xff]
    %v61 = vld [vmem:[#allocation2 + $0x58] sm:$0xff]
    %v62 = vld [vmem:[#allocation2 + $0x60] sm:$0xff]
    %v63 = vld [vmem:[#allocation2 + $0x68] sm:$0xff]
    %v64 = vld [vmem:[#allocation2 + $0x70] sm:$0xff]
    %v65 = vld [vmem:[#allocation2 + $0x78] sm:$0xff]
    %v66 = vld [vmem:[#allocation2 + $0x80] sm:$0xff]
    %v67 = vld [vmem:[#allocation2 + $0x88] sm:$0xff]
    %v68 = vld [vmem:[#allocation2 + $0x90] sm:$0xff]
    %v69 = vld [vmem:[#allocation2 + $0x98] sm:$0xff]
    %v70 = vld [vmem:[#allocation2 + $0xa0] sm:$0xff]
    %v71 = vld [vmem:[#allocation2 + $0xa8] sm:$0xff]
    %v72 = vld [vmem:[#allocation2 + $0xb0] sm:$0xff]
    %v73 = vld [vmem:[#allocation2 + $0xb8] sm:$0xff]
    %v74 = vld [vmem:[#allocation2 + $0xc0] sm:$0xff]
    %v75 = vld [vmem:[#allocation2 + $0xc8] sm:$0xff]
    %v76 = vld [vmem:[#allocation2 + $0xd0] sm:$0xff]
    %v77 = vld [vmem:[#allocation2 + $0xd8] sm:$0xff]
    %v78 = vld [vmem:[#allocation2 + $0xe0] sm:$0xff]
    %v79 = vld [vmem:[#allocation2 + $0xe8] sm:$0xff]
    %v80 = vld [vmem:[#allocation2 + $0xf0] sm:$0xff]
    %v81 = vld [vmem:[#allocation2 + $0xf8] sm:$0xff]
    %v82 = vld [vmem:[%s2] sm:$0x3]
    %v84 = vlaneseq
    %v85 = vshrl.u32 %v84, 7
    %v86 = vsub.s32 0, %v85
    %v87 = vrot.slane %v82, %v86
    %v88 = vlaneseq
    %v89 = vshrl.u32 %v88, 7
    %v90 = vsub.s32 1, %v89
    %v91 = vrot.slane %v82, %v90
    %94 = vmatprep.subr.mxu0 %v51
    %95 = vmatpush1.msra.mxu0 %v50
    %96 = vmatprep.subr.mxu0 %v53
    %97 = vmatpush1.msra.mxu0 %v52
    %98 = vmatprep.subr.mxu0 %v55
    %99 = vmatpush1.msra.mxu0 %v54
    %100 = vmatprep.subr.mxu0 %v57
    %101 = vmatpush1.msra.mxu0 %v56
    %102 = vmatprep.subr.mxu0 %v59
    %103 = vmatpush1.msra.mxu0 %v58
    %104 = vmatprep.subr.mxu0 %v61
    %105 = vmatpush1.msra.mxu0 %v60
    %106 = vmatprep.subr.mxu0 %v63
    %107 = vmatpush1.msra.mxu0 %v62
    %108 = vmatprep.subr.mxu0 %v65
    %109 = vmatpush1.msra.mxu0 %v64
    %110 = vmatprep.subr.mxu0 %v67
    %111 = vmatpush1.msra.mxu0 %v66
    %112 = vmatprep.subr.mxu0 %v69
    %113 = vmatpush1.msra.mxu0 %v68
    %114 = vmatprep.subr.mxu0 %v71
    %115 = vmatpush1.msra.mxu0 %v70
    %116 = vmatprep.subr.mxu0 %v73
    %117 = vmatpush1.msra.mxu0 %v72
    %118 = vmatprep.subr.mxu0 %v75
    %119 = vmatpush1.msra.mxu0 %v74
    %120 = vmatprep.subr.mxu0 %v77
    %121 = vmatpush1.msra.mxu0 %v76
    %122 = vmatprep.subr.mxu0 %v79
    %123 = vmatpush1.msra.mxu0 %v78
    %124 = vmatprep.subr.mxu0 %v81
    %125 = vmatpush1.msra.mxu0 %v80
    %126 = vmatprep.subr.mxu0 0.0
    %127 = vmatpush1.msra.mxu0 0.0
    %128 = vmatprep.subr.mxu0 0.0
    %129 = vmatpush1.msra.mxu0 0.0
    %130 = vmatprep.subr.mxu0 0.0
    %131 = vmatpush1.msra.mxu0 0.0
    %132 = vmatprep.subr.mxu0 0.0
    %133 = vmatpush1.msra.mxu0 0.0
    %134 = vmatprep.subr.mxu0 0.0
    %135 = vmatpush1.msra.mxu0 0.0
    %136 = vmatprep.subr.mxu0 0.0
    %137 = vmatpush1.msra.mxu0 0.0
    %138 = vmatprep.subr.mxu0 0.0
    %139 = vmatpush1.msra.mxu0 0.0
    %140 = vmatprep.subr.mxu0 0.0
    %141 = vmatpush1.msra.mxu0 0.0
    %142 = vmatprep.subr.mxu0 0.0
    %143 = vmatpush1.msra.mxu0 0.0
    %144 = vmatprep.subr.mxu0 0.0
    %145 = vmatpush1.msra.mxu0 0.0
    %146 = vmatprep.subr.mxu0 0.0
    %147 = vmatpush1.msra.mxu0 0.0
    %148 = vmatprep.subr.mxu0 0.0
    %149 = vmatpush1.msra.mxu0 0.0
    %150 = vmatprep.subr.mxu0 0.0
    %151 = vmatpush1.msra.mxu0 0.0
    %152 = vmatprep.subr.mxu0 0.0
    %153 = vmatpush1.msra.mxu0 0.0
    %154 = vmatprep.subr.mxu0 0.0
    %155 = vmatpush1.msra.mxu0 0.0
    %156 = vmatprep.subr.mxu0 0.0
    %157 = vmatpush1.msra.mxu0 0.0
    %158 = vmatprep.mubr.f32.mxu0 0.0
    %159 = vmatmul.mubr.f32.gmra.mrb[0].mxu0 %v49
    %v160 = vpop.f32.mrb[0].mxu0
    %v161 = vadd.f32 %v87, %v160
    %v162 = vpop.f32.mrb[0].mxu0
    %v163 = vadd.f32 %v91, %v162
    %164 = vdwg.mxu0
    %v165 = vtanh.pop %v161
    %v166 = vtanh.pop %v163
    %v167 = vld [vmem:[#allocation5] sm:$0xff]
    %v168 = vld [vmem:[#allocation5 + $0x8] sm:$0xff]
    %v169 = vld [vmem:[#allocation5 + $0x10] sm:$0xff]
    %v170 = vld [vmem:[#allocation5 + $0x18] sm:$0xff]
    %v171 = vld [vmem:[#allocation5 + $0x20] sm:$0xff]
    %v172 = vld [vmem:[#allocation5 + $0x28] sm:$0xff]
    %v173 = vld [vmem:[#allocation5 + $0x30] sm:$0xff]
    %v174 = vld [vmem:[#allocation5 + $0x38] sm:$0xff]
    %v175 = vld [vmem:[#allocation5 + $0x40] sm:$0xff]
    %v176 = vld [vmem:[#allocation5 + $0x48] sm:$0xff]
    %v177 = vld [vmem:[#allocation5 + $0x50] sm:$0xff]
    %v178 = vld [vmem:[#allocation5 + $0x58] sm:$0xff]
    %v179 = vld [vmem:[#allocation5 + $0x60] sm:$0xff]
    %v180 = vld [vmem:[#allocation5 + $0x68] sm:$0xff]
    %v181 = vld [vmem:[#allocation5 + $0x70] sm:$0xff]
    %v182 = vld [vmem:[#allocation5 + $0x78] sm:$0xff]
    %v183 = vld [vmem:[#allocation5 + $0x80] sm:$0xff]
    %v184 = vld [vmem:[#allocation5 + $0x88] sm:$0xff]
    %v185 = vld [vmem:[#allocation5 + $0x90] sm:$0xff]
    %v186 = vld [vmem:[#allocation5 + $0x98] sm:$0xff]
    %v187 = vld [vmem:[#allocation5 + $0xa0] sm:$0xff]
    %v188 = vld [vmem:[#allocation5 + $0xa8] sm:$0xff]
    %v189 = vld [vmem:[#allocation5 + $0xb0] sm:$0xff]
    %v190 = vld [vmem:[#allocation5 + $0xb8] sm:$0xff]
    %v191 = vld [vmem:[#allocation5 + $0xc0] sm:$0xff]
    %v192 = vld [vmem:[#allocation5 + $0xc8] sm:$0xff]
    %v193 = vld [vmem:[#allocation5 + $0xd0] sm:$0xff]
    %v194 = vld [vmem:[#allocation5 + $0xd8] sm:$0xff]
    %v195 = vld [vmem:[#allocation5 + $0xe0] sm:$0xff]
    %v196 = vld [vmem:[#allocation5 + $0xe8] sm:$0xff]
    %v197 = vld [vmem:[#allocation5 + $0xf0] sm:$0xff]
    %v198 = vld [vmem:[#allocation5 + $0xf8] sm:$0xff]
    %v199 = vld [vmem:[%s4] sm:$0x1]
    %v201 = vlaneseq
    %v202 = vshrl.u32 %v201, 7
    %v203 = vsub.s32 0, %v202
    %v204 = vrot.slane %v199, %v203
    %206 = vmatprep.subr.mxu0 0.0
    %207 = vmatpush1.msra.mxu0 %v167
    %208 = vmatprep.subr.mxu0 0.0
    %209 = vmatpush1.msra.mxu0 %v168
    %210 = vmatprep.subr.mxu0 0.0
    %211 = vmatpush1.msra.mxu0 %v169
    %212 = vmatprep.subr.mxu0 0.0
    %213 = vmatpush1.msra.mxu0 %v170
    %214 = vmatprep.subr.mxu0 0.0
    %215 = vmatpush1.msra.mxu0 %v171
    %216 = vmatprep.subr.mxu0 0.0
    %217 = vmatpush1.msra.mxu0 %v172
    %218 = vmatprep.subr.mxu0 0.0
    %219 = vmatpush1.msra.mxu0 %v173
    %220 = vmatprep.subr.mxu0 0.0
    %221 = vmatpush1.msra.mxu0 %v174
    %222 = vmatprep.subr.mxu0 0.0
    %223 = vmatpush1.msra.mxu0 %v175
    %224 = vmatprep.subr.mxu0 0.0
    %225 = vmatpush1.msra.mxu0 %v176
    %226 = vmatprep.subr.mxu0 0.0
    %227 = vmatpush1.msra.mxu0 %v177
    %228 = vmatprep.subr.mxu0 0.0
    %229 = vmatpush1.msra.mxu0 %v178
    %230 = vmatprep.subr.mxu0 0.0
    %231 = vmatpush1.msra.mxu0 %v179
    %232 = vmatprep.subr.mxu0 0.0
    %233 = vmatpush1.msra.mxu0 %v180
    %234 = vmatprep.subr.mxu0 0.0
    %235 = vmatpush1.msra.mxu0 %v181
    %236 = vmatprep.subr.mxu0 0.0
    %237 = vmatpush1.msra.mxu0 %v182
    %238 = vmatprep.subr.mxu0 0.0
    %239 = vmatpush1.msra.mxu0 %v183
    %240 = vmatprep.subr.mxu0 0.0
    %241 = vmatpush1.msra.mxu0 %v184
    %242 = vmatprep.subr.mxu0 0.0
    %243 = vmatpush1.msra.mxu0 %v185
    %244 = vmatprep.subr.mxu0 0.0
    %245 = vmatpush1.msra.mxu0 %v186
    %246 = vmatprep.subr.mxu0 0.0
    %247 = vmatpush1.msra.mxu0 %v187
    %248 = vmatprep.subr.mxu0 0.0
    %249 = vmatpush1.msra.mxu0 %v188
    %250 = vmatprep.subr.mxu0 0.0
    %251 = vmatpush1.msra.mxu0 %v189
    %252 = vmatprep.subr.mxu0 0.0
    %253 = vmatpush1.msra.mxu0 %v190
    %254 = vmatprep.subr.mxu0 0.0
    %255 = vmatpush1.msra.mxu0 %v191
    %256 = vmatprep.subr.mxu0 0.0
    %257 = vmatpush1.msra.mxu0 %v192
    %258 = vmatprep.subr.mxu0 0.0
    %259 = vmatpush1.msra.mxu0 %v193
    %260 = vmatprep.subr.mxu0 0.0
    %261 = vmatpush1.msra.mxu0 %v194
    %262 = vmatprep.subr.mxu0 0.0
    %263 = vmatpush1.msra.mxu0 %v195
    %264 = vmatprep.subr.mxu0 0.0
    %265 = vmatpush1.msra.mxu0 %v196
    %266 = vmatprep.subr.mxu0 0.0
    %267 = vmatpush1.msra.mxu0 %v197
    %268 = vmatprep.subr.mxu0 0.0
    %269 = vmatpush1.msra.mxu0 %v198
    %270 = vmatprep.mubr.f32.mxu0 %v166
    %271 = vmatmul.mubr.f32.gmra.mrb[0].mxu0 %v165
    %v272 = vpop.f32.mrb[0].mxu0
    %v273 = vadd.f32 %v204, %v272
    %v274 = vpop.f32.mrb[0].mxu0
    %275 = vdwg.mxu0
    %276 = vst [vmem:[#allocation7] sm:$0xff] %v273
    // Predicated region
    $region30: #{dagger_expert_forward.1} parent=1 // pred_check
      _
    $region31: #{dagger_expert_forward.1} parent=1 // pred_check_branch
      %278 = sbr.rel (0) target = $region33
    $region32: #{dagger_expert_forward.1} parent=1 // pred_region
      %s280 = ssub.s32 128, 128
      %281 = vsyncadd [#allocation4], %s280
      %s283 = sshll.u32 [#allocation7], 4
      %s284 = int_to_ptr.vmem [resolvable:$true] %s283
      %286 = dma.vmem_to_hbm [thread:$0]  %s284, 128, %s5, [#allocation4]
    $region33: #{dagger_expert_forward.1} parent=1 // pred_fallthru
      _
    // Predicated region
    $region34: #{dagger_expert_forward.1} parent=1 // pred_check
      _
    $region35: #{dagger_expert_forward.1} parent=1 // pred_check_branch
      %288 = sbr.rel (0) target = $region37
    $region36: #{dagger_expert_forward.1} parent=1 // pred_region
      %289 = dma.done [#allocation4], 128
    $region37: #{dagger_expert_forward.1} parent=1 // pred_fallthru
      _
    %290 = vsyncpa [#allocation3], 1
    %291 = vsyncpa [#allocation6], 1
    %292 = vsyncpa [#allocation4], 1

</llo_original>
